<compile_context>
chip_gen: v5e
topology: v5e:2x2
jax: 0.10.0
libtpu: 0.0.40
codegen_flags: <defaults>
</compile_context>

<pallas_src>
import functools

import jax
import jax.numpy as jnp
from jax import lax
from jax.experimental import pallas as pl
from jax.experimental.pallas import tpu as pltpu

SUBLANE = 8  # f32 sublane height


def _round_up(n: int, m: int) -> int:
    return ((n + m - 1) // m) * m


# ----------------------------------------------------------------------------
# Kernel
# ----------------------------------------------------------------------------
def _mlp_kernel(x_ref, w1_ref, b1_ref, w2_ref, b2_ref, w3_ref, b3_ref, o_ref):
    """One batch tile: fc1 -> relu -> fc2 -> relu -> fc3, fully fused.

    x_ref:  (TB, n_in)       f32
    w*_ref: (fan_in, fan_out) f32, VMEM-resident across all grid steps
    b*_ref: (1, fan_out)      f32
    o_ref:  (TB, n_out)       f32, logical width (no lane padding)
    """
    dot = lambda a, b: jnp.dot(a, b, preferred_element_type=jnp.float32,
                               precision=lax.Precision.HIGHEST)

    x = x_ref[...]
    h1 = jnp.maximum(dot(x, w1_ref[...]) + b1_ref[...], 0.0)
    h2 = jnp.maximum(dot(h1, w2_ref[...]) + b2_ref[...], 0.0)
    o_ref[...] = (dot(h2, w3_ref[...]) + b3_ref[...]).astype(o_ref.dtype)


# ----------------------------------------------------------------------------
# Wrapper
# ----------------------------------------------------------------------------
@functools.partial(jax.jit, static_argnames=("block_b",))
def net_forward(x, params, *, block_b=4096):
    """Pallas forward for Net.  params = (w1, b1, w2, b2, w3, b3), weights (in, out)."""
    w1, b1, w2, b2, w3, b3 = params
    x = x.astype(jnp.float32)
    B, n_in = x.shape
    n_mid1 = w1.shape[1]
    n_mid2 = w2.shape[1]
    n_out = w3.shape[1]

    # Batch tile: multiple of the f32 sublane height, capped at block_b, and
    # sized so that large batches produce >= ~8 grid steps (keeps both v7x
    # TensorCores busy and leaves room for input/output DMA overlap).
    tb = max(SUBLANE, min(block_b, _round_up(pl.cdiv(B, 8), SUBLANE)))
    grid = (pl.cdiv(B, tb),)

    # Logical (un-padded) cost estimate for XLA's scheduler.
    flops = 2 * B * (n_in * n_mid1 + n_mid1 * n_mid2 + n_mid2 * n_out)
    bytes_accessed = (B * n_in * 4 + B * n_out * 4
                      + (w1.size + w2.size + w3.size
                         + b1.size + b2.size + b3.size) * 4)

    resident = lambda a: pl.BlockSpec(a.shape, lambda i: (0, 0))

    return pl.pallas_call(
        _mlp_kernel,
        out_shape=jax.ShapeDtypeStruct((B, n_out), jnp.float32),
        grid=grid,
        in_specs=[
            pl.BlockSpec((tb, n_in), lambda i: (i, 0)),   # x: tiled over batch only
            resident(w1), resident(b1),                   # weights/biases stay
            resident(w2), resident(b2),                   # VMEM-resident across
            resident(w3), resident(b3),                   # every grid step
        ],
        out_specs=pl.BlockSpec((tb, n_out), lambda i: (i, 0)),
        compiler_params=pltpu.CompilerParams(
            dimension_semantics=("parallel",)),           # megacore on v7x
        cost_estimate=pl.CostEstimate(
            flops=flops, transcendentals=0, bytes_accessed=bytes_accessed),
    )(x, w1, b1, w2, b2, w3, b3)


# ----------------------------------------------------------------------------
# Init + reference
# ----------------------------------------------------------------------------
def init_params(key, n_in, n_mid1, n_mid2, n_out):
    """torch.nn.Linear-style init (uniform +/- 1/sqrt(fan_in)); weights stored (in, out)."""
    ks = jax.random.split(key, 6)

    def lin(kw, kb, fan_in, fan_out):
        bound = 1.0 / jnp.sqrt(jnp.float32(fan_in))
        w = jax.random.uniform(kw, (fan_in, fan_out), jnp.float32, -bound, bound)
        b = jax.random.uniform(kb, (1, fan_out), jnp.float32, -bound, bound)
        return w, b

    w1, b1 = lin(ks[0], ks[1], n_in, n_mid1)
    w2, b2 = lin(ks[2], ks[3], n_mid1, n_mid2)
    w3, b3 = lin(ks[4], ks[5], n_mid2, n_out)
    return (w1, b1, w2, b2, w3, b3)


def net_forward_ref(x, params):
    """Pure-JAX f32 reference mirroring the PyTorch module semantics."""
    w1, b1, w2, b2, w3, b3 = params
    dot = lambda a, b: jnp.dot(a, b, precision=lax.Precision.HIGHEST)
    h1 = jnp.maximum(dot(x, w1) + b1, 0.0)
    h2 = jnp.maximum(dot(h1, w2) + b2, 0.0)
    return dot(h2, w3) + b3


# ----------------------------------------------------------------------------
if __name__ == "__main__":
    n_in, n_mid1, n_mid2, n_out = 8, 32, 32, 4

    key = jax.random.PRNGKey(0)
    k_x, k_p, k_x2 = jax.random.split(key, 3)
    params = init_params(k_p, n_in, n_mid1, n_mid2, n_out)

    # Small (spec-sized) batch: single ragged grid step.
    batch = 2
    x = jax.random.normal(k_x, (batch, n_in), jnp.float32)
    out = net_forward(x, params)
    jax.block_until_ready(out)
    assert out.shape == (batch, n_out)

    ref = net_forward_ref(x, params)
    assert jnp.allclose(out, ref, atol=1e-4, rtol=1e-4), "mismatch vs f32 reference"

    # Larger batch exercises the multi-step, pipelined batch grid (8 steps).
    big = 1024
    xb = jax.random.normal(k_x2, (big, n_in), jnp.float32)
    out_b = net_forward(xb, params)
    jax.block_until_ready(out_b)
    ref_b = net_forward_ref(xb, params)
    assert out_b.shape == (big, n_out)
    assert jnp.allclose(out_b, ref_b, atol=1e-4, rtol=1e-4), "mismatch (big batch)"

    print("KERNEL_OK")
</pallas_src>

<mosaic_0001>
module attributes {stable_mosaic.version = 11 : i64} {
  func.func @_mlp_kernel(%arg0: i32, %arg1: memref<8x8xf32, #tpu.memory_space<vmem>>, %arg2: memref<8x32xf32, #tpu.memory_space<vmem>>, %arg3: memref<1x32xf32, #tpu.memory_space<vmem>>, %arg4: memref<32x32xf32, #tpu.memory_space<vmem>>, %arg5: memref<1x32xf32, #tpu.memory_space<vmem>>, %arg6: memref<32x4xf32, #tpu.memory_space<vmem>>, %arg7: memref<1x4xf32, #tpu.memory_space<vmem>>, %arg8: memref<8x4xf32, #tpu.memory_space<vmem>>) attributes {dimension_semantics = [#tpu.dimension_semantics<parallel>], iteration_bounds = array<i64: 1>, scalar_prefetch = 0 : i64, scratch_operands = 0 : i64, tpu.core_type = #tpu.core_type<tc>, window_params = [{transform_indices = @transform_0, window_bounds = array<i64: 8, 8>}, {pipeline_mode = #tpu.pipeline_mode<synchronous>, transform_indices = @transform_1, window_bounds = array<i64: 8, 32>}, {pipeline_mode = #tpu.pipeline_mode<synchronous>, transform_indices = @transform_2, window_bounds = array<i64: 1, 32>}, {pipeline_mode = #tpu.pipeline_mode<synchronous>, transform_indices = @transform_3, window_bounds = array<i64: 32, 32>}, {pipeline_mode = #tpu.pipeline_mode<synchronous>, transform_indices = @transform_4, window_bounds = array<i64: 1, 32>}, {pipeline_mode = #tpu.pipeline_mode<synchronous>, transform_indices = @transform_5, window_bounds = array<i64: 32, 4>}, {pipeline_mode = #tpu.pipeline_mode<synchronous>, transform_indices = @transform_6, window_bounds = array<i64: 1, 4>}, {transform_indices = @transform_7, window_bounds = array<i64: 8, 4>}]} {
    %c0 = arith.constant 0 : index
    %c0_0 = arith.constant 0 : index
    %0 = vector.load %arg1[%c0, %c0_0] : memref<8x8xf32, #tpu.memory_space<vmem>>, vector<8x8xf32>
    %c0_1 = arith.constant 0 : index
    %c0_2 = arith.constant 0 : index
    %1 = vector.load %arg2[%c0_1, %c0_2] : memref<8x32xf32, #tpu.memory_space<vmem>>, vector<8x32xf32>
    %cst = arith.constant dense<0.000000e+00> : vector<8x32xf32>
    %2 = tpu.matmul %0, %1, %cst {dimension_numbers = #tpu.dot_dimension_numbers<[1], [0], [0], [1], [0, 0, 1, 1], [], []>, precision = #tpu.contract_precision<fp32>} : vector<8x8xf32>, vector<8x32xf32>, vector<8x32xf32> -> vector<8x32xf32>
    %c0_3 = arith.constant 0 : index
    %c0_4 = arith.constant 0 : index
    %3 = vector.load %arg3[%c0_3, %c0_4] : memref<1x32xf32, #tpu.memory_space<vmem>>, vector<1x32xf32>
    %4 = vector.broadcast %3 : vector<1x32xf32> to vector<8x32xf32>
    %5 = arith.addf %2, %4 : vector<8x32xf32>
    %cst_5 = arith.constant 0.000000e+00 : f32
    %6 = vector.broadcast %cst_5 : f32 to vector<8x32xf32>
    %7 = arith.maximumf %5, %6 : vector<8x32xf32>
    %c0_6 = arith.constant 0 : index
    %c0_7 = arith.constant 0 : index
    %8 = vector.load %arg4[%c0_6, %c0_7] : memref<32x32xf32, #tpu.memory_space<vmem>>, vector<32x32xf32>
    %cst_8 = arith.constant dense<0.000000e+00> : vector<8x32xf32>
    %9 = tpu.matmul %7, %8, %cst_8 {dimension_numbers = #tpu.dot_dimension_numbers<[1], [0], [0], [1], [0, 0, 1, 1], [], []>, precision = #tpu.contract_precision<fp32>} : vector<8x32xf32>, vector<32x32xf32>, vector<8x32xf32> -> vector<8x32xf32>
    %c0_9 = arith.constant 0 : index
    %c0_10 = arith.constant 0 : index
    %10 = vector.load %arg5[%c0_9, %c0_10] : memref<1x32xf32, #tpu.memory_space<vmem>>, vector<1x32xf32>
    %11 = vector.broadcast %10 : vector<1x32xf32> to vector<8x32xf32>
    %12 = arith.addf %9, %11 : vector<8x32xf32>
    %cst_11 = arith.constant 0.000000e+00 : f32
    %13 = vector.broadcast %cst_11 : f32 to vector<8x32xf32>
    %14 = arith.maximumf %12, %13 : vector<8x32xf32>
    %c0_12 = arith.constant 0 : index
    %c0_13 = arith.constant 0 : index
    %15 = vector.load %arg6[%c0_12, %c0_13] : memref<32x4xf32, #tpu.memory_space<vmem>>, vector<32x4xf32>
    %cst_14 = arith.constant dense<0.000000e+00> : vector<8x4xf32>
    %16 = tpu.matmul %14, %15, %cst_14 {dimension_numbers = #tpu.dot_dimension_numbers<[1], [0], [0], [1], [0, 0, 1, 1], [], []>, precision = #tpu.contract_precision<fp32>} : vector<8x32xf32>, vector<32x4xf32>, vector<8x4xf32> -> vector<8x4xf32>
    %c0_15 = arith.constant 0 : index
    %c0_16 = arith.constant 0 : index
    %17 = vector.load %arg7[%c0_15, %c0_16] : memref<1x4xf32, #tpu.memory_space<vmem>>, vector<1x4xf32>
    %18 = vector.broadcast %17 : vector<1x4xf32> to vector<8x4xf32>
    %19 = arith.addf %16, %18 : vector<8x4xf32>
    %c0_17 = arith.constant 0 : index
    %c0_18 = arith.constant 0 : index
    %20 = vector.load %arg8[%c0_17, %c0_18] : memref<8x4xf32, #tpu.memory_space<vmem>>, vector<8x4xf32>
    tpu.vector_store %arg8[%c0_17, %c0_18], %19 {strides = array<i32>} : memref<8x4xf32, #tpu.memory_space<vmem>>, vector<8x4xf32>,
    return
  }
  func.func @transform_0(%arg0: i32) -> (i32, i32) {
    %c0_i32 = arith.constant 0 : i32
    %c0_i32_0 = arith.constant 0 : i32
    return %arg0, %c0_i32 : i32, i32
  }
  func.func @transform_1(%arg0: i32) -> (i32, i32) {
    %c0_i32 = arith.constant 0 : i32
    %c0_i32_0 = arith.constant 0 : i32
    %c0_i32_1 = arith.constant 0 : i32
    return %c0_i32, %c0_i32_0 : i32, i32
  }
  func.func @transform_2(%arg0: i32) -> (i32, i32) {
    %c0_i32 = arith.constant 0 : i32
    %c0_i32_0 = arith.constant 0 : i32
    %c0_i32_1 = arith.constant 0 : i32
    return %c0_i32, %c0_i32_0 : i32, i32
  }
  func.func @transform_3(%arg0: i32) -> (i32, i32) {
    %c0_i32 = arith.constant 0 : i32
    %c0_i32_0 = arith.constant 0 : i32
    %c0_i32_1 = arith.constant 0 : i32
    return %c0_i32, %c0_i32_0 : i32, i32
  }
  func.func @transform_4(%arg0: i32) -> (i32, i32) {
    %c0_i32 = arith.constant 0 : i32
    %c0_i32_0 = arith.constant 0 : i32
    %c0_i32_1 = arith.constant 0 : i32
    return %c0_i32, %c0_i32_0 : i32, i32
  }
  func.func @transform_5(%arg0: i32) -> (i32, i32) {
    %c0_i32 = arith.constant 0 : i32
    %c0_i32_0 = arith.constant 0 : i32
    %c0_i32_1 = arith.constant 0 : i32
    return %c0_i32, %c0_i32_0 : i32, i32
  }
  func.func @transform_6(%arg0: i32) -> (i32, i32) {
    %c0_i32 = arith.constant 0 : i32
    %c0_i32_0 = arith.constant 0 : i32
    %c0_i32_1 = arith.constant 0 : i32
    return %c0_i32, %c0_i32_0 : i32, i32
  }
  func.func @transform_7(%arg0: i32) -> (i32, i32) {
    %c0_i32 = arith.constant 0 : i32
    %c0_i32_0 = arith.constant 0 : i32
    return %arg0, %c0_i32 : i32, i32
  }
}

</mosaic_0001>

<llo_original>
// kernel: net_forward.1
$region0: #{net_forward.1}
  #allocation0 [shape = 'u32[]', space=smem, size = 0x4, offset = 0x4, fixed_abs, tag = 'smem constant byte address 0x4 - core index']
  #allocation1 [shape = 'u32[72,128]{1,0:T(1,128)}', space=vmem, size = 0x9000, scoped, tag = 'internal scratch']
  %s0 = inlined_call_operand.vmem [shape: f32[2,8], index: 0, kind: input, shape index: {}]
  %s1 = inlined_call_operand.hbm [shape: f32[8,32], index: 1, kind: input, shape index: {}]
  %s2 = inlined_call_operand.vmem [shape: f32[1,32], index: 2, kind: input, shape index: {}]
  %s3 = inlined_call_operand.vmem [shape: f32[32,32], index: 3, kind: input, shape index: {}]
  %s4 = inlined_call_operand.vmem [shape: f32[1,32], index: 4, kind: input, shape index: {}]
  %s5 = inlined_call_operand.vmem [shape: f32[32,4], index: 5, kind: input, shape index: {}]
  %s6 = inlined_call_operand.vmem [shape: f32[1,4], index: 6, kind: input, shape index: {}]
  %s7 = inlined_call_operand.hbm [shape: f32[2,4], index: 7, kind: output, shape index: {}]
  %s8 = sld [smem:[#allocation0]]
  $region42: #{net_forward.1} parent=0
    _
  %s10 = ssub.s32 1, %s8
  %s11 = scalar_select 0, %s10, %s8
  $region1: #{net_forward.1} parent=0
    #allocation2 [shape = 'u8[4096]{0}', space=vmem, size = 0x1000, scoped, tag = 'input window, operand 1, single buffered']
    #allocation3 [shape = 's32[1]{0}', space=sflag, size = 0x4, scoped, tag = 'scoped memory for net_forward.1']
    #allocation4 [shape = 's32[1]{0}', space=sflag, size = 0x4, scoped, tag = 'scoped memory for net_forward.1']
    #allocation5 [shape = 'u8[4096]{0}', space=vmem, size = 0x1000, scoped, tag = 'output window, operand 0, single buffered']
    %12 = vsyncpa [#allocation3], 0
    %13 = vsyncpa [#allocation4], 0
    // Predicated region
    $region2: #{net_forward.1} parent=1 // pred_check
      _
    $region3: #{net_forward.1} parent=1 // pred_check_branch
      %15 = sbr.rel (0) target = $region5
    $region4: #{net_forward.1} parent=1 // pred_region
      _
    $region5: #{net_forward.1} parent=1 // pred_fallthru
      _
    // Predicated region
    $region6: #{net_forward.1} parent=1 // pred_check
      _
    $region7: #{net_forward.1} parent=1 // pred_check_branch
      %17 = sbr.rel (0) target = $region9
    $region8: #{net_forward.1} parent=1 // pred_region
      %19 = vsyncadd [#allocation3], 0
      %s21 = sshll.u32 %s1, 4
      %s22 = int_to_ptr.hbm [resolvable:$true] %s21
      %s23 = sshll.u32 [#allocation2], 4
      %s24 = int_to_ptr.vmem [resolvable:$true] %s23
      %26 = dma.hbm_to_vmem [thread:$0]  %s22, 128, %s24, [#allocation3]
    $region9: #{net_forward.1} parent=1 // pred_fallthru
      _
    // Predicated region
    $region10: #{net_forward.1} parent=1 // pred_check
      _
    $region11: #{net_forward.1} parent=1 // pred_check_branch
      %28 = sbr.rel (0) target = $region13
    $region12: #{net_forward.1} parent=1 // pred_region
      _
    $region13: #{net_forward.1} parent=1 // pred_fallthru
      _
    // Predicated region
    $region14: #{net_forward.1} parent=1 // pred_check
      _
    $region15: #{net_forward.1} parent=1 // pred_check_branch
      %30 = sbr.rel (0) target = $region17
    $region16: #{net_forward.1} parent=1 // pred_region
      _
    $region17: #{net_forward.1} parent=1 // pred_fallthru
      _
    // Predicated region
    $region18: #{net_forward.1} parent=1 // pred_check
      _
    $region19: #{net_forward.1} parent=1 // pred_check_branch
      %32 = sbr.rel (0) target = $region21
    $region20: #{net_forward.1} parent=1 // pred_region
      _
    $region21: #{net_forward.1} parent=1 // pred_fallthru
      _
    // Predicated region
    $region22: #{net_forward.1} parent=1 // pred_check
      _
    $region23: #{net_forward.1} parent=1 // pred_check_branch
      %34 = sbr.rel (0) target = $region25
    $region24: #{net_forward.1} parent=1 // pred_region
      _
    $region25: #{net_forward.1} parent=1 // pred_fallthru
      _
    // Predicated region
    $region26: #{net_forward.1} parent=1 // pred_check
      _
    $region27: #{net_forward.1} parent=1 // pred_check_branch
      %36 = sbr.rel (0) target = $region29
    $region28: #{net_forward.1} parent=1 // pred_region
      _
    $region29: #{net_forward.1} parent=1 // pred_fallthru
      _
    // Predicated region
    $region30: #{net_forward.1} parent=1 // pred_check
      _
    $region31: #{net_forward.1} parent=1 // pred_check_branch
      %38 = sbr.rel (0) target = $region33
    $region32: #{net_forward.1} parent=1 // pred_region
      %40 = dma.done [#allocation3], 128
    $region33: #{net_forward.1} parent=1 // pred_fallthru
      _
    %v41 = vld [vmem:[%s0] sm:$0xff]
    %v42 = vld [vmem:[#allocation2] sm:$0xff]
    %v43 = vld [vmem:[%s2] sm:$0x1]
    %v45 = vperm.slane %v43, 0
    %vm47 = vcmask 64512
    %v49 = vsel %vm47, %v41, 0
    %51 = vmatpush.msra.mxu0 0.0
    %52 = vmatpush.msra.mxu0 0.0
    %53 = vmatpush.msra.mxu0 0.0
    %54 = vmatpush.msra.mxu0 0.0
    %55 = vmatpush.msra.mxu0 0.0
    %56 = vmatpush.msra.mxu0 0.0
    %57 = vmatpush.msra.mxu0 0.0
    %58 = vmatpush.msra.mxu0 0.0
    %59 = vmatpush.msra.mxu0 0.0
    %60 = vmatpush.msra.mxu0 0.0
    %61 = vmatpush.msra.mxu0 0.0
    %62 = vmatpush.msra.mxu0 0.0
    %63 = vmatpush.msra.mxu0 0.0
    %64 = vmatpush.msra.mxu0 0.0
    %65 = vmatpush.msra.mxu0 0.0
    %v66 = vand.u32 %v42, 4294901760
    %67 = vmatpush.msra.mxu0 %v66
    %v68 = vand.u32 %v49, 4294901760
    %v69 = vsub.f32 %v49, %v68
    %v70 = vand.u32 %v69, 4294901760
    %v71 = vsub.f32 %v69, %v70
    %v72 = vand.u32 %v71, 4294901760
    %73 = vmatmul.f32.gmra.mxu0 %v72
    %v74 = vpop.f32.mrf.mxu0
    %v75 = vadd.f32 %v45, %v74
    %76 = vdwg.mxu0
    %77 = vmatpush.msra.mxu0 0.0
    %78 = vmatpush.msra.mxu0 0.0
    %79 = vmatpush.msra.mxu0 0.0
    %80 = vmatpush.msra.mxu0 0.0
    %81 = vmatpush.msra.mxu0 0.0
    %82 = vmatpush.msra.mxu0 0.0
    %83 = vmatpush.msra.mxu0 0.0
    %84 = vmatpush.msra.mxu0 0.0
    %85 = vmatpush.msra.mxu0 0.0
    %86 = vmatpush.msra.mxu0 0.0
    %87 = vmatpush.msra.mxu0 0.0
    %88 = vmatpush.msra.mxu0 0.0
    %89 = vmatpush.msra.mxu0 0.0
    %90 = vmatpush.msra.mxu0 0.0
    %91 = vmatpush.msra.mxu0 0.0
    %v92 = vand.u32 %v42, 4294901760
    %v93 = vsub.f32 %v42, %v92
    %v94 = vand.u32 %v93, 4294901760
    %v95 = vsub.f32 %v93, %v94
    %v96 = vand.u32 %v95, 4294901760
    %97 = vmatpush.msra.mxu0 %v96
    %v98 = vand.u32 %v49, 4294901760
    %99 = vmatmul.f32.gmra.mxu0 %v98
    %v100 = vpop.f32.mrf.mxu0
    %v101 = vadd.f32 %v75, %v100
    %102 = vdwg.mxu0
    %103 = vmatpush.msra.mxu0 0.0
    %104 = vmatpush.msra.mxu0 0.0
    %105 = vmatpush.msra.mxu0 0.0
    %106 = vmatpush.msra.mxu0 0.0
    %107 = vmatpush.msra.mxu0 0.0
    %108 = vmatpush.msra.mxu0 0.0
    %109 = vmatpush.msra.mxu0 0.0
    %110 = vmatpush.msra.mxu0 0.0
    %111 = vmatpush.msra.mxu0 0.0
    %112 = vmatpush.msra.mxu0 0.0
    %113 = vmatpush.msra.mxu0 0.0
    %114 = vmatpush.msra.mxu0 0.0
    %115 = vmatpush.msra.mxu0 0.0
    %116 = vmatpush.msra.mxu0 0.0
    %117 = vmatpush.msra.mxu0 0.0
    %v118 = vand.u32 %v42, 4294901760
    %v119 = vsub.f32 %v42, %v118
    %120 = vmatpush.msra.mxu0 %v119
    %v121 = vand.u32 %v49, 4294901760
    %v122 = vsub.f32 %v49, %v121
    %123 = vmatmul.f32.gmra.mxu0 %v122
    %v124 = vpop.f32.mrf.mxu0
    %v125 = vadd.f32 %v101, %v124
    %126 = vdwg.mxu0
    %127 = vmatpush.msra.mxu0 0.0
    %128 = vmatpush.msra.mxu0 0.0
    %129 = vmatpush.msra.mxu0 0.0
    %130 = vmatpush.msra.mxu0 0.0
    %131 = vmatpush.msra.mxu0 0.0
    %132 = vmatpush.msra.mxu0 0.0
    %133 = vmatpush.msra.mxu0 0.0
    %134 = vmatpush.msra.mxu0 0.0
    %135 = vmatpush.msra.mxu0 0.0
    %136 = vmatpush.msra.mxu0 0.0
    %137 = vmatpush.msra.mxu0 0.0
    %138 = vmatpush.msra.mxu0 0.0
    %139 = vmatpush.msra.mxu0 0.0
    %140 = vmatpush.msra.mxu0 0.0
    %141 = vmatpush.msra.mxu0 0.0
    %v142 = vand.u32 %v42, 4294901760
    %143 = vmatpush.msra.mxu0 %v142
    %v144 = vand.u32 %v49, 4294901760
    %v145 = vsub.f32 %v49, %v144
    %v146 = vand.u32 %v145, 4294901760
    %147 = vmatmul.f32.gmra.mxu0 %v146
    %v148 = vpop.f32.mrf.mxu0
    %v149 = vadd.f32 %v125, %v148
    %150 = vdwg.mxu0
    %151 = vmatpush.msra.mxu0 0.0
    %152 = vmatpush.msra.mxu0 0.0
    %153 = vmatpush.msra.mxu0 0.0
    %154 = vmatpush.msra.mxu0 0.0
    %155 = vmatpush.msra.mxu0 0.0
    %156 = vmatpush.msra.mxu0 0.0
    %157 = vmatpush.msra.mxu0 0.0
    %158 = vmatpush.msra.mxu0 0.0
    %159 = vmatpush.msra.mxu0 0.0
    %160 = vmatpush.msra.mxu0 0.0
    %161 = vmatpush.msra.mxu0 0.0
    %162 = vmatpush.msra.mxu0 0.0
    %163 = vmatpush.msra.mxu0 0.0
    %164 = vmatpush.msra.mxu0 0.0
    %165 = vmatpush.msra.mxu0 0.0
    %v166 = vand.u32 %v42, 4294901760
    %v167 = vsub.f32 %v42, %v166
    %v168 = vand.u32 %v167, 4294901760
    %169 = vmatpush.msra.mxu0 %v168
    %v170 = vand.u32 %v49, 4294901760
    %171 = vmatmul.f32.gmra.mxu0 %v170
    %v172 = vpop.f32.mrf.mxu0
    %v173 = vadd.f32 %v149, %v172
    %174 = vdwg.mxu0
    %175 = vmatpush.msra.mxu0 0.0
    %176 = vmatpush.msra.mxu0 0.0
    %177 = vmatpush.msra.mxu0 0.0
    %178 = vmatpush.msra.mxu0 0.0
    %179 = vmatpush.msra.mxu0 0.0
    %180 = vmatpush.msra.mxu0 0.0
    %181 = vmatpush.msra.mxu0 0.0
    %182 = vmatpush.msra.mxu0 0.0
    %183 = vmatpush.msra.mxu0 0.0
    %184 = vmatpush.msra.mxu0 0.0
    %185 = vmatpush.msra.mxu0 0.0
    %186 = vmatpush.msra.mxu0 0.0
    %187 = vmatpush.msra.mxu0 0.0
    %188 = vmatpush.msra.mxu0 0.0
    %189 = vmatpush.msra.mxu0 0.0
    %v190 = vand.u32 %v42, 4294901760
    %191 = vmatpush.msra.mxu0 %v190
    %v192 = vand.u32 %v49, 4294901760
    %193 = vmatmul.f32.gmra.mxu0 %v192
    %v194 = vpop.f32.mrf.mxu0
    %v195 = vadd.f32 %v173, %v194
    %196 = vdwg.mxu0
    %v197 = vmax.f32 %v195, 0.0
    %v198 = vld [vmem:[%s3] sm:$0xff]
    %v199 = vld [vmem:[%s3 + $0x8] sm:$0xff]
    %v200 = vld [vmem:[%s3 + $0x10] sm:$0xff]
    %v201 = vld [vmem:[%s3 + $0x18] sm:$0xff]
    %v202 = vld [vmem:[%s4] sm:$0x1]
    %v204 = vperm.slane %v202, 0
    %vm206 = vcmask 261120
    %v208 = vsel %vm206, %v197, 0
    %210 = vmatpush.msra.mxu0 0.0
    %211 = vmatpush.msra.mxu0 0.0
    %212 = vmatpush.msra.mxu0 0.0
    %213 = vmatpush.msra.mxu0 0.0
    %214 = vmatpush.msra.mxu0 0.0
    %215 = vmatpush.msra.mxu0 0.0
    %216 = vmatpush.msra.mxu0 0.0
    %217 = vmatpush.msra.mxu0 0.0
    %218 = vmatpush.msra.mxu0 0.0
    %219 = vmatpush.msra.mxu0 0.0
    %220 = vmatpush.msra.mxu0 0.0
    %221 = vmatpush.msra.mxu0 0.0
    %v222 = vand.u32 %v201, 4294901760
    %223 = vmatpush.msra.mxu0 %v222
    %v224 = vand.u32 %v200, 4294901760
    %225 = vmatpush.msra.mxu0 %v224
    %v226 = vand.u32 %v199, 4294901760
    %227 = vmatpush.msra.mxu0 %v226
    %v228 = vand.u32 %v198, 4294901760
    %229 = vmatpush.msra.mxu0 %v228
    %v230 = vand.u32 %v208, 4294901760
    %v231 = vsub.f32 %v208, %v230
    %v232 = vand.u32 %v231, 4294901760
    %v233 = vsub.f32 %v231, %v232
    %v234 = vand.u32 %v233, 4294901760
    %235 = vmatmul.f32.gmra.mxu0 %v234
    %v236 = vpop.f32.mrf.mxu0
    %v237 = vadd.f32 %v204, %v236
    %238 = vdwg.mxu0
    %239 = vmatpush.msra.mxu0 0.0
    %240 = vmatpush.msra.mxu0 0.0
    %241 = vmatpush.msra.mxu0 0.0
    %242 = vmatpush.msra.mxu0 0.0
    %243 = vmatpush.msra.mxu0 0.0
    %244 = vmatpush.msra.mxu0 0.0
    %245 = vmatpush.msra.mxu0 0.0
    %246 = vmatpush.msra.mxu0 0.0
    %247 = vmatpush.msra.mxu0 0.0
    %248 = vmatpush.msra.mxu0 0.0
    %249 = vmatpush.msra.mxu0 0.0
    %250 = vmatpush.msra.mxu0 0.0
    %v251 = vand.u32 %v201, 4294901760
    %v252 = vsub.f32 %v201, %v251
    %v253 = vand.u32 %v252, 4294901760
    %v254 = vsub.f32 %v252, %v253
    %v255 = vand.u32 %v254, 4294901760
    %256 = vmatpush.msra.mxu0 %v255
    %v257 = vand.u32 %v200, 4294901760
    %v258 = vsub.f32 %v200, %v257
    %v259 = vand.u32 %v258, 4294901760
    %v260 = vsub.f32 %v258, %v259
    %v261 = vand.u32 %v260, 4294901760
    %262 = vmatpush.msra.mxu0 %v261
    %v263 = vand.u32 %v199, 4294901760
    %v264 = vsub.f32 %v199, %v263
    %v265 = vand.u32 %v264, 4294901760
    %v266 = vsub.f32 %v264, %v265
    %v267 = vand.u32 %v266, 4294901760
    %268 = vmatpush.msra.mxu0 %v267
    %v269 = vand.u32 %v198, 4294901760
    %v270 = vsub.f32 %v198, %v269
    %v271 = vand.u32 %v270, 4294901760
    %v272 = vsub.f32 %v270, %v271
    %v273 = vand.u32 %v272, 4294901760
    %274 = vmatpush.msra.mxu0 %v273
    %v275 = vand.u32 %v208, 4294901760
    %276 = vmatmul.f32.gmra.mxu0 %v275
    %v277 = vpop.f32.mrf.mxu0
    %v278 = vadd.f32 %v237, %v277
    %279 = vdwg.mxu0
    %280 = vmatpush.msra.mxu0 0.0
    %281 = vmatpush.msra.mxu0 0.0
    %282 = vmatpush.msra.mxu0 0.0
    %283 = vmatpush.msra.mxu0 0.0
    %284 = vmatpush.msra.mxu0 0.0
    %285 = vmatpush.msra.mxu0 0.0
    %286 = vmatpush.msra.mxu0 0.0
    %287 = vmatpush.msra.mxu0 0.0
    %288 = vmatpush.msra.mxu0 0.0
    %289 = vmatpush.msra.mxu0 0.0
    %290 = vmatpush.msra.mxu0 0.0
    %291 = vmatpush.msra.mxu0 0.0
    %v292 = vand.u32 %v201, 4294901760
    %v293 = vsub.f32 %v201, %v292
    %294 = vmatpush.msra.mxu0 %v293
    %v295 = vand.u32 %v200, 4294901760
    %v296 = vsub.f32 %v200, %v295
    %297 = vmatpush.msra.mxu0 %v296
    %v298 = vand.u32 %v199, 4294901760
    %v299 = vsub.f32 %v199, %v298
    %300 = vmatpush.msra.mxu0 %v299
    %v301 = vand.u32 %v198, 4294901760
    %v302 = vsub.f32 %v198, %v301
    %303 = vmatpush.msra.mxu0 %v302
    %v304 = vand.u32 %v208, 4294901760
    %v305 = vsub.f32 %v208, %v304
    %306 = vmatmul.f32.gmra.mxu0 %v305
    %v307 = vpop.f32.mrf.mxu0
    %v308 = vadd.f32 %v278, %v307
    %309 = vdwg.mxu0
    %310 = vmatpush.msra.mxu0 0.0
    %311 = vmatpush.msra.mxu0 0.0
    %312 = vmatpush.msra.mxu0 0.0
    %313 = vmatpush.msra.mxu0 0.0
    %314 = vmatpush.msra.mxu0 0.0
    %315 = vmatpush.msra.mxu0 0.0
    %316 = vmatpush.msra.mxu0 0.0
    %317 = vmatpush.msra.mxu0 0.0
    %318 = vmatpush.msra.mxu0 0.0
    %319 = vmatpush.msra.mxu0 0.0
    %320 = vmatpush.msra.mxu0 0.0
    %321 = vmatpush.msra.mxu0 0.0
    %v322 = vand.u32 %v201, 4294901760
    %323 = vmatpush.msra.mxu0 %v322
    %v324 = vand.u32 %v200, 4294901760
    %325 = vmatpush.msra.mxu0 %v324
    %v326 = vand.u32 %v199, 4294901760
    %327 = vmatpush.msra.mxu0 %v326
    %v328 = vand.u32 %v198, 4294901760
    %329 = vmatpush.msra.mxu0 %v328
    %v330 = vand.u32 %v208, 4294901760
    %v331 = vsub.f32 %v208, %v330
    %v332 = vand.u32 %v331, 4294901760
    %333 = vmatmul.f32.gmra.mxu0 %v332
    %v334 = vpop.f32.mrf.mxu0
    %v335 = vadd.f32 %v308, %v334
    %336 = vdwg.mxu0
    %337 = vmatpush.msra.mxu0 0.0
    %338 = vmatpush.msra.mxu0 0.0
    %339 = vmatpush.msra.mxu0 0.0
    %340 = vmatpush.msra.mxu0 0.0
    %341 = vmatpush.msra.mxu0 0.0
    %342 = vmatpush.msra.mxu0 0.0
    %343 = vmatpush.msra.mxu0 0.0
    %344 = vmatpush.msra.mxu0 0.0
    %345 = vmatpush.msra.mxu0 0.0
    %346 = vmatpush.msra.mxu0 0.0
    %347 = vmatpush.msra.mxu0 0.0
    %348 = vmatpush.msra.mxu0 0.0
    %v349 = vand.u32 %v201, 4294901760
    %v350 = vsub.f32 %v201, %v349
    %v351 = vand.u32 %v350, 4294901760
    %352 = vmatpush.msra.mxu0 %v351
    %v353 = vand.u32 %v200, 4294901760
    %v354 = vsub.f32 %v200, %v353
    %v355 = vand.u32 %v354, 4294901760
    %356 = vmatpush.msra.mxu0 %v355
    %v357 = vand.u32 %v199, 4294901760
    %v358 = vsub.f32 %v199, %v357
    %v359 = vand.u32 %v358, 4294901760
    %360 = vmatpush.msra.mxu0 %v359
    %v361 = vand.u32 %v198, 4294901760
    %v362 = vsub.f32 %v198, %v361
    %v363 = vand.u32 %v362, 4294901760
    %364 = vmatpush.msra.mxu0 %v363
    %v365 = vand.u32 %v208, 4294901760
    %366 = vmatmul.f32.gmra.mxu0 %v365
    %v367 = vpop.f32.mrf.mxu0
    %v368 = vadd.f32 %v335, %v367
    %369 = vdwg.mxu0
    %370 = vmatpush.msra.mxu0 0.0
    %371 = vmatpush.msra.mxu0 0.0
    %372 = vmatpush.msra.mxu0 0.0
    %373 = vmatpush.msra.mxu0 0.0
    %374 = vmatpush.msra.mxu0 0.0
    %375 = vmatpush.msra.mxu0 0.0
    %376 = vmatpush.msra.mxu0 0.0
    %377 = vmatpush.msra.mxu0 0.0
    %378 = vmatpush.msra.mxu0 0.0
    %379 = vmatpush.msra.mxu0 0.0
    %380 = vmatpush.msra.mxu0 0.0
    %381 = vmatpush.msra.mxu0 0.0
    %v382 = vand.u32 %v201, 4294901760
    %383 = vmatpush.msra.mxu0 %v382
    %v384 = vand.u32 %v200, 4294901760
    %385 = vmatpush.msra.mxu0 %v384
    %v386 = vand.u32 %v199, 4294901760
    %387 = vmatpush.msra.mxu0 %v386
    %v388 = vand.u32 %v198, 4294901760
    %389 = vmatpush.msra.mxu0 %v388
    %v390 = vand.u32 %v208, 4294901760
    %391 = vmatmul.f32.gmra.mxu0 %v390
    %v392 = vpop.f32.mrf.mxu0
    %v393 = vadd.f32 %v368, %v392
    %394 = vdwg.mxu0
    %v395 = vmax.f32 %v393, 0.0
    %v396 = vld [vmem:[%s5] sm:$0xff]
    %v397 = vld [vmem:[%s5 + $0x8] sm:$0xff]
    %v398 = vld [vmem:[%s5 + $0x10] sm:$0xff]
    %v399 = vld [vmem:[%s5 + $0x18] sm:$0xff]
    %v400 = vld [vmem:[%s6] sm:$0x1]
    %v402 = vperm.slane %v400, 0
    %v405 = vsel %vm206, %v395, 0
    %407 = vmatpush.msra.mxu0 0.0
    %408 = vmatpush.msra.mxu0 0.0
    %409 = vmatpush.msra.mxu0 0.0
    %410 = vmatpush.msra.mxu0 0.0
    %411 = vmatpush.msra.mxu0 0.0
    %412 = vmatpush.msra.mxu0 0.0
    %413 = vmatpush.msra.mxu0 0.0
    %414 = vmatpush.msra.mxu0 0.0
    %415 = vmatpush.msra.mxu0 0.0
    %416 = vmatpush.msra.mxu0 0.0
    %417 = vmatpush.msra.mxu0 0.0
    %418 = vmatpush.msra.mxu0 0.0
    %v419 = vand.u32 %v399, 4294901760
    %420 = vmatpush.msra.mxu0 %v419
    %v421 = vand.u32 %v398, 4294901760
    %422 = vmatpush.msra.mxu0 %v421
    %v423 = vand.u32 %v397, 4294901760
    %424 = vmatpush.msra.mxu0 %v423
    %v425 = vand.u32 %v396, 4294901760
    %426 = vmatpush.msra.mxu0 %v425
    %v427 = vand.u32 %v405, 4294901760
    %v428 = vsub.f32 %v405, %v427
    %v429 = vand.u32 %v428, 4294901760
    %v430 = vsub.f32 %v428, %v429
    %v431 = vand.u32 %v430, 4294901760
    %432 = vmatmul.f32.gmra.mxu0 %v431
    %v433 = vpop.f32.mrf.mxu0
    %v434 = vadd.f32 %v402, %v433
    %435 = vdwg.mxu0
    %436 = vmatpush.msra.mxu0 0.0
    %437 = vmatpush.msra.mxu0 0.0
    %438 = vmatpush.msra.mxu0 0.0
    %439 = vmatpush.msra.mxu0 0.0
    %440 = vmatpush.msra.mxu0 0.0
    %441 = vmatpush.msra.mxu0 0.0
    %442 = vmatpush.msra.mxu0 0.0
    %443 = vmatpush.msra.mxu0 0.0
    %444 = vmatpush.msra.mxu0 0.0
    %445 = vmatpush.msra.mxu0 0.0
    %446 = vmatpush.msra.mxu0 0.0
    %447 = vmatpush.msra.mxu0 0.0
    %v448 = vand.u32 %v399, 4294901760
    %v449 = vsub.f32 %v399, %v448
    %v450 = vand.u32 %v449, 4294901760
    %v451 = vsub.f32 %v449, %v450
    %v452 = vand.u32 %v451, 4294901760
    %453 = vmatpush.msra.mxu0 %v452
    %v454 = vand.u32 %v398, 4294901760
    %v455 = vsub.f32 %v398, %v454
    %v456 = vand.u32 %v455, 4294901760
    %v457 = vsub.f32 %v455, %v456
    %v458 = vand.u32 %v457, 4294901760
    %459 = vmatpush.msra.mxu0 %v458
    %v460 = vand.u32 %v397, 4294901760
    %v461 = vsub.f32 %v397, %v460
    %v462 = vand.u32 %v461, 4294901760
    %v463 = vsub.f32 %v461, %v462
    %v464 = vand.u32 %v463, 4294901760
    %465 = vmatpush.msra.mxu0 %v464
    %v466 = vand.u32 %v396, 4294901760
    %v467 = vsub.f32 %v396, %v466
    %v468 = vand.u32 %v467, 4294901760
    %v469 = vsub.f32 %v467, %v468
    %v470 = vand.u32 %v469, 4294901760
    %471 = vmatpush.msra.mxu0 %v470
    %v472 = vand.u32 %v405, 4294901760
    %473 = vmatmul.f32.gmra.mxu0 %v472
    %v474 = vpop.f32.mrf.mxu0
    %v475 = vadd.f32 %v434, %v474
    %476 = vdwg.mxu0
    %477 = vmatpush.msra.mxu0 0.0
    %478 = vmatpush.msra.mxu0 0.0
    %479 = vmatpush.msra.mxu0 0.0
    %480 = vmatpush.msra.mxu0 0.0
    %481 = vmatpush.msra.mxu0 0.0
    %482 = vmatpush.msra.mxu0 0.0
    %483 = vmatpush.msra.mxu0 0.0
    %484 = vmatpush.msra.mxu0 0.0
    %485 = vmatpush.msra.mxu0 0.0
    %486 = vmatpush.msra.mxu0 0.0
    %487 = vmatpush.msra.mxu0 0.0
    %488 = vmatpush.msra.mxu0 0.0
    %v489 = vand.u32 %v399, 4294901760
    %v490 = vsub.f32 %v399, %v489
    %491 = vmatpush.msra.mxu0 %v490
    %v492 = vand.u32 %v398, 4294901760
    %v493 = vsub.f32 %v398, %v492
    %494 = vmatpush.msra.mxu0 %v493
    %v495 = vand.u32 %v397, 4294901760
    %v496 = vsub.f32 %v397, %v495
    %497 = vmatpush.msra.mxu0 %v496
    %v498 = vand.u32 %v396, 4294901760
    %v499 = vsub.f32 %v396, %v498
    %500 = vmatpush.msra.mxu0 %v499
    %v501 = vand.u32 %v405, 4294901760
    %v502 = vsub.f32 %v405, %v501
    %503 = vmatmul.f32.gmra.mxu0 %v502
    %v504 = vpop.f32.mrf.mxu0
    %v505 = vadd.f32 %v475, %v504
    %506 = vdwg.mxu0
    %507 = vmatpush.msra.mxu0 0.0
    %508 = vmatpush.msra.mxu0 0.0
    %509 = vmatpush.msra.mxu0 0.0
    %510 = vmatpush.msra.mxu0 0.0
    %511 = vmatpush.msra.mxu0 0.0
    %512 = vmatpush.msra.mxu0 0.0
    %513 = vmatpush.msra.mxu0 0.0
    %514 = vmatpush.msra.mxu0 0.0
    %515 = vmatpush.msra.mxu0 0.0
    %516 = vmatpush.msra.mxu0 0.0
    %517 = vmatpush.msra.mxu0 0.0
    %518 = vmatpush.msra.mxu0 0.0
    %v519 = vand.u32 %v399, 4294901760
    %520 = vmatpush.msra.mxu0 %v519
    %v521 = vand.u32 %v398, 4294901760
    %522 = vmatpush.msra.mxu0 %v521
    %v523 = vand.u32 %v397, 4294901760
    %524 = vmatpush.msra.mxu0 %v523
    %v525 = vand.u32 %v396, 4294901760
    %526 = vmatpush.msra.mxu0 %v525
    %v527 = vand.u32 %v405, 4294901760
    %v528 = vsub.f32 %v405, %v527
    %v529 = vand.u32 %v528, 4294901760
    %530 = vmatmul.f32.gmra.mxu0 %v529
    %v531 = vpop.f32.mrf.mxu0
    %v532 = vadd.f32 %v505, %v531
    %533 = vdwg.mxu0
    %534 = vmatpush.msra.mxu0 0.0
    %535 = vmatpush.msra.mxu0 0.0
    %536 = vmatpush.msra.mxu0 0.0
    %537 = vmatpush.msra.mxu0 0.0
    %538 = vmatpush.msra.mxu0 0.0
    %539 = vmatpush.msra.mxu0 0.0
    %540 = vmatpush.msra.mxu0 0.0
    %541 = vmatpush.msra.mxu0 0.0
    %542 = vmatpush.msra.mxu0 0.0
    %543 = vmatpush.msra.mxu0 0.0
    %544 = vmatpush.msra.mxu0 0.0
    %545 = vmatpush.msra.mxu0 0.0
    %v546 = vand.u32 %v399, 4294901760
    %v547 = vsub.f32 %v399, %v546
    %v548 = vand.u32 %v547, 4294901760
    %549 = vmatpush.msra.mxu0 %v548
    %v550 = vand.u32 %v398, 4294901760
    %v551 = vsub.f32 %v398, %v550
    %v552 = vand.u32 %v551, 4294901760
    %553 = vmatpush.msra.mxu0 %v552
    %v554 = vand.u32 %v397, 4294901760
    %v555 = vsub.f32 %v397, %v554
    %v556 = vand.u32 %v555, 4294901760
    %557 = vmatpush.msra.mxu0 %v556
    %v558 = vand.u32 %v396, 4294901760
    %v559 = vsub.f32 %v396, %v558
    %v560 = vand.u32 %v559, 4294901760
    %561 = vmatpush.msra.mxu0 %v560
    %v562 = vand.u32 %v405, 4294901760
    %563 = vmatmul.f32.gmra.mxu0 %v562
    %v564 = vpop.f32.mrf.mxu0
    %v565 = vadd.f32 %v532, %v564
    %566 = vdwg.mxu0
    %567 = vmatpush.msra.mxu0 0.0
    %568 = vmatpush.msra.mxu0 0.0
    %569 = vmatpush.msra.mxu0 0.0
    %570 = vmatpush.msra.mxu0 0.0
    %571 = vmatpush.msra.mxu0 0.0
    %572 = vmatpush.msra.mxu0 0.0
    %573 = vmatpush.msra.mxu0 0.0
    %574 = vmatpush.msra.mxu0 0.0
    %575 = vmatpush.msra.mxu0 0.0
    %576 = vmatpush.msra.mxu0 0.0
    %577 = vmatpush.msra.mxu0 0.0
    %578 = vmatpush.msra.mxu0 0.0
    %v579 = vand.u32 %v399, 4294901760
    %580 = vmatpush.msra.mxu0 %v579
    %v581 = vand.u32 %v398, 4294901760
    %582 = vmatpush.msra.mxu0 %v581
    %v583 = vand.u32 %v397, 4294901760
    %584 = vmatpush.msra.mxu0 %v583
    %v585 = vand.u32 %v396, 4294901760
    %586 = vmatpush.msra.mxu0 %v585
    %v587 = vand.u32 %v405, 4294901760
    %588 = vmatmul.f32.gmra.mxu0 %v587
    %v589 = vpop.f32.mrf.mxu0
    %v590 = vadd.f32 %v565, %v589
    %591 = vdwg.mxu0
    %vm592 = vcmask 31744
    %593 = vst.msk [vmem:[#allocation5] sm:$0xff] %vm592, %v590
    // Predicated region
    $region34: #{net_forward.1} parent=1 // pred_check
      _
    $region35: #{net_forward.1} parent=1 // pred_check_branch
      %595 = sbr.rel (0) target = $region37
    $region36: #{net_forward.1} parent=1 // pred_region
      %597 = vsyncadd [#allocation4], 96
      %s598 = sshll.u32 [#allocation5], 4
      %s599 = int_to_ptr.vmem [resolvable:$true] %s598
      %s600 = sshll.u32 %s7, 4
      %s601 = int_to_ptr.hbm [resolvable:$true] %s600
      %606 = dma.vmem_to_hbm [thread:$0]  %s599, 32, %s601, [#allocation4], 32, 32, 2
    $region37: #{net_forward.1} parent=1 // pred_fallthru
      _
    // Predicated region
    $region38: #{net_forward.1} parent=1 // pred_check
      _
    $region39: #{net_forward.1} parent=1 // pred_check_branch
      %608 = sbr.rel (0) target = $region41
    $region40: #{net_forward.1} parent=1 // pred_region
      %610 = dma.done [#allocation4], 128
    $region41: #{net_forward.1} parent=1 // pred_fallthru
      _
    %611 = vsyncpa [#allocation3], 1
    %612 = vsyncpa [#allocation4], 1

</llo_original>
